<compile_context>
chip_gen: v5e
topology: v5e:2x2
jax: 0.10.0
libtpu: 0.0.40
codegen_flags: <defaults>
</compile_context>

<pallas_src>
import functools

import jax
import jax.numpy as jnp
from jax import lax
from jax.experimental import pallas as pl
from jax.experimental.pallas import tpu as pltpu

F_DIM = 32            # image feature dim (matches Attention(32, ...))
C_VOL = 8             # feature-volume channel dim
HIDDEN = 64           # agg-net MLP hidden dim
AGG_IN = 3 * F_DIM + 2 * C_VOL + 3     # 115 raw agg feature width
AGG_IN_PAD = 128                       # lane-aligned agg feature width
VMEM_LIMIT = 32 * 1024 * 1024          # explicit scoped-VMEM request (safe on v5e/v6e/v7x)
GATHER_MAX_HW = 4096                   # one-hot-matmul gather only for small feature maps


def _round_up(x, m):
    return ((x + m - 1) // m) * m


def _choose_tile(M, tm_max, align=8):
    """Pick an M tile: as large as allowed, multiple of `align`, and split into >=2
    grid steps when a single step would cover everything (v7x megacore balance)."""
    tm = min(tm_max, _round_up(max(M, 1), align))
    if M > tm:
        return tm
    if M >= 2 * align:
        return _round_up((M + 1) // 2, align)
    return tm


# ---------------------------------------------------------------------------
# Pallas kernels
# ---------------------------------------------------------------------------

def _linear_kernel(x_ref, w_ref, b_ref, o_ref, *, activation):
    xb = x_ref[...].astype(jnp.bfloat16)
    wb = w_ref[...].astype(jnp.bfloat16)
    y = jnp.dot(xb, wb, preferred_element_type=jnp.float32) + b_ref[...]
    if activation == "relu":
        y = jnp.maximum(y, 0.0)
    o_ref[...] = y


def pallas_linear(x, w, b, activation=None, tm=8192):
    """(M, K) @ (K, N) + b with optional ReLU.  M tiled on a 'parallel' grid with
    boundary blocks (no host jnp.pad); bf16 MXU operands with f32 accumulation."""
    M, K = x.shape
    _, N = w.shape
    tm = _choose_tile(M, tm)
    kernel = functools.partial(_linear_kernel, activation=activation)
    return pl.pallas_call(
        kernel,
        out_shape=jax.ShapeDtypeStruct((M, N), jnp.float32),
        grid=(pl.cdiv(M, tm),),
        in_specs=[pl.BlockSpec((tm, K), lambda i: (i, 0)),
                  pl.BlockSpec((K, N), lambda i: (0, 0)),
                  pl.BlockSpec((1, N), lambda i: (0, 0))],
        out_specs=pl.BlockSpec((tm, N), lambda i: (i, 0)),
        compiler_params=pltpu.CompilerParams(
            dimension_semantics=("parallel",),
            vmem_limit_bytes=VMEM_LIMIT),
    )(x, w, b.reshape(1, N))


def pallas_encoder_linear(x, w, b, activation="relu", group=4, tm=8192):
    """Lane-dense image-encoder linear: pack `group` pixels per row and use a
    block-diagonal weight so the output block is group*N (=128) lanes wide."""
    M, K = x.shape
    N = w.shape[1]
    if M % group != 0:
        return pallas_linear(x, w, b, activation, tm=tm)
    xg = x.reshape(M // group, group * K)                       # free (contiguous)
    eye = jnp.eye(group, dtype=w.dtype)
    w_bd = (eye[:, None, :, None] * w[None, :, None, :]).reshape(group * K, group * N)
    b_bd = jnp.tile(b, group)
    yg = pallas_linear(xg, w_bd, b_bd, activation, tm=max(tm // group, 8))
    return yg.reshape(M, N)                                     # free (contiguous)


def _agg_mlp_kernel(x_ref, w1_ref, b1_ref, w2_ref, b2_ref, o_ref):
    # Fused 2-layer MLP; hidden activation stays in VMEM; single merged output:
    # column 0 = raw density, columns 1..3 = sigmoid(rgb).
    xb = x_ref[...].astype(jnp.bfloat16)
    h = jnp.dot(xb, w1_ref[...].astype(jnp.bfloat16),
                preferred_element_type=jnp.float32) + b1_ref[...]
    h = jnp.maximum(h, 0.0)
    out = jnp.dot(h.astype(jnp.bfloat16), w2_ref[...].astype(jnp.bfloat16),
                  preferred_element_type=jnp.float32) + b2_ref[...]
    lane = lax.broadcasted_iota(jnp.int32, out.shape, 1)
    o_ref[...] = jnp.where(lane == 0, out, jax.nn.sigmoid(out))


def pallas_agg_mlp(x, w1, b1, w2, b2, tm=8192):
    """Fused agg-net MLP: relu(x@w1+b1)@w2+b2 -> merged (M, 4) output
    [density, sigmoid(r), sigmoid(g), sigmoid(b)].  x is already 128-lane wide."""
    M, K = x.shape
    H = w1.shape[1]
    NO = w2.shape[1]
    tm = _choose_tile(M, tm)
    return pl.pallas_call(
        _agg_mlp_kernel,
        out_shape=jax.ShapeDtypeStruct((M, NO), jnp.float32),
        grid=(pl.cdiv(M, tm),),
        in_specs=[pl.BlockSpec((tm, K), lambda i: (i, 0)),
                  pl.BlockSpec((K, H), lambda i: (0, 0)),
                  pl.BlockSpec((1, H), lambda i: (0, 0)),
                  pl.BlockSpec((H, NO), lambda i: (0, 0)),
                  pl.BlockSpec((1, NO), lambda i: (0, 0))],
        out_specs=pl.BlockSpec((tm, NO), lambda i: (i, 0)),
        compiler_params=pltpu.CompilerParams(
            dimension_semantics=("parallel",),
            vmem_limit_bytes=VMEM_LIMIT),
    )(x, w1, b1.reshape(1, H), w2, b2.reshape(1, NO))


def _attention_kernel(q_ref, kv_ref, wq_ref, wkv_ref, wo_ref, o_ref,
                      qp_sc, m_sc, l_sc, acc_sc, *, l_valid, tk):
    # Flash-style cross attention with query tiling; KV axis is the innermost
    # 'arbitrary' grid axis with online-softmax accumulators.  1/sqrt(F) folded into qp.
    F = q_ref.shape[-1]
    kv_i = pl.program_id(2)

    @pl.when(kv_i == 0)
    def _():
        scale = 1.0 / jnp.sqrt(jnp.float32(F))
        qp = jnp.dot(q_ref[0].astype(jnp.bfloat16), wq_ref[...].astype(jnp.bfloat16),
                     preferred_element_type=jnp.float32)
        qp_sc[...] = qp * scale
        m_sc[...] = jnp.full_like(m_sc, -jnp.inf)
        l_sc[...] = jnp.zeros_like(l_sc)
        acc_sc[...] = jnp.zeros_like(acc_sc)

    kvp = jnp.dot(kv_ref[0].astype(jnp.bfloat16), wkv_ref[...].astype(jnp.bfloat16),
                  preferred_element_type=jnp.float32)            # (TK, 2F) fused K|V
    kp = kvp[:, :F]
    vp = kvp[:, F:]
    s = lax.dot_general(qp_sc[...].astype(jnp.bfloat16), kp.astype(jnp.bfloat16),
                        (((1,), (1,)), ((), ())),
                        preferred_element_type=jnp.float32)      # (TQ, TK)
    col = kv_i * tk + lax.broadcasted_iota(jnp.int32, s.shape, 1)
    s = jnp.where(col < l_valid, s, -1e30)                       # mask padded keys
    m_prev = m_sc[...]
    m_new = jnp.maximum(m_prev, jnp.max(s, axis=-1, keepdims=True))
    a = jnp.exp(m_prev - m_new)
    p = jnp.exp(s - m_new)
    l_sc[...] = a * l_sc[...] + jnp.sum(p, axis=-1, keepdims=True)
    acc_sc[...] = a * acc_sc[...] + jnp.dot(p.astype(jnp.bfloat16),
                                            vp.astype(jnp.bfloat16),
                                            preferred_element_type=jnp.float32)
    m_sc[...] = m_new

    @pl.when(kv_i == pl.num_programs(2) - 1)
    def _():
        out = acc_sc[...] * pl.reciprocal(l_sc[...], approx=True)
        o_ref[0] = jnp.dot(out.astype(jnp.bfloat16), wo_ref[...].astype(jnp.bfloat16),
                           preferred_element_type=jnp.float32)


def pallas_attention(q_feats, kv_feats, wq, wkv, wo, tq=512, tk=128):
    R, L, F = q_feats.shape
    TQ = min(tq, _round_up(L, 8))
    Lk = _round_up(L, tk)
    if Lk != L:                       # zero-pad keys; padded columns masked in-kernel
        kv_feats = jnp.pad(kv_feats, ((0, 0), (0, Lk - L), (0, 0)))
    nq = pl.cdiv(L, TQ)
    nkv = Lk // tk
    kernel = functools.partial(_attention_kernel, l_valid=L, tk=tk)
    return pl.pallas_call(
        kernel,
        out_shape=jax.ShapeDtypeStruct((R, L, F), jnp.float32),
        grid=(R, nq, nkv),
        in_specs=[pl.BlockSpec((1, TQ, F), lambda r, q, k: (r, q, 0)),
                  pl.BlockSpec((1, tk, F), lambda r, q, k: (r, k, 0)),
                  pl.BlockSpec((F, F), lambda r, q, k: (0, 0)),
                  pl.BlockSpec((F, 2 * F), lambda r, q, k: (0, 0)),
                  pl.BlockSpec((F, F), lambda r, q, k: (0, 0))],
        out_specs=pl.BlockSpec((1, TQ, F), lambda r, q, k: (r, q, 0)),
        scratch_shapes=[pltpu.VMEM((TQ, F), jnp.float32),
                        pltpu.VMEM((TQ, 1), jnp.float32),
                        pltpu.VMEM((TQ, 1), jnp.float32),
                        pltpu.VMEM((TQ, F), jnp.float32)],
        compiler_params=pltpu.CompilerParams(
            dimension_semantics=("parallel", "parallel", "arbitrary"),
            vmem_limit_bytes=VMEM_LIMIT),
    )(q_feats, kv_feats, wq, wkv, wo)


def _render_kernel(density_ref, colors_ref, depth_ref,
                   alpha_ref, hit_ref, pc_ref, pd_ref):
    # Lane-dense layout: depth samples D on sublanes, rays R on lanes.
    relu_d = jnp.maximum(density_ref[...], 0.0)                  # (D, TR)
    alpha = 1.0 - jnp.exp(-relu_d)                               # 1 - exp(-relu(density))
    # hit_prob[i] = alpha[i] * prod_{j<i}(1 - alpha[j])  with
    # log(1 - alpha[j] + 1e-10) ~= -relu(density[j])  (epsilon-level difference).
    d = density_ref.shape[0]
    row = lax.broadcasted_iota(jnp.int32, (d, d), 0)
    col = lax.broadcasted_iota(jnp.int32, (d, d), 1)
    tri = (col < row).astype(jnp.float32)                        # strict lower triangle
    cum_excl = jnp.dot(tri, relu_d, preferred_element_type=jnp.float32)
    trans = jnp.exp(-cum_excl)
    hit = alpha * trans
    alpha_ref[...] = alpha
    hit_ref[...] = hit
    pc_ref[...] = jnp.sum(hit[None] * colors_ref[...], axis=1)                   # (3, TR)
    pd_ref[...] = jnp.sum(hit * depth_ref[...], axis=0, keepdims=True)           # (1, TR)


def pallas_render_composite(density, colors, depth, tr_max=4096):
    # density/depth: (R, D); colors: (R, D, 3).  Rays sit on the lane axis (dense,
    # unmasked stores), tiled on a 'parallel' grid.
    R, D = density.shape
    dens_t = density.T                           # (D, R)
    col_t = jnp.transpose(colors, (2, 1, 0))     # (3, D, R)
    dep_t = depth.T                              # (D, R)
    if R % 128 == 0:
        Rp = R
    else:
        Rp = _round_up(R, 128)
        pad = Rp - R
        dens_t = jnp.pad(dens_t, ((0, 0), (0, pad)))
        col_t = jnp.pad(col_t, ((0, 0), (0, 0), (0, pad)))
        dep_t = jnp.pad(dep_t, ((0, 0), (0, pad)))
    TR = min(tr_max, Rp)
    if TR == Rp and Rp >= 256 and (Rp // 2) % 128 == 0:
        TR = Rp // 2                             # keep >=2 parallel steps (v7x megacore)
    alpha_t, hit_t, pc_t, pd_t = pl.pallas_call(
        _render_kernel,
        out_shape=(jax.ShapeDtypeStruct((D, Rp), jnp.float32),
                   jax.ShapeDtypeStruct((D, Rp), jnp.float32),
                   jax.ShapeDtypeStruct((3, Rp), jnp.float32),
                   jax.ShapeDtypeStruct((1, Rp), jnp.float32)),
        grid=(pl.cdiv(Rp, TR),),
        in_specs=[pl.BlockSpec((D, TR), lambda i: (0, i)),
                  pl.BlockSpec((3, D, TR), lambda i: (0, 0, i)),
                  pl.BlockSpec((D, TR), lambda i: (0, i))],
        out_specs=(pl.BlockSpec((D, TR), lambda i: (0, i)),
                   pl.BlockSpec((D, TR), lambda i: (0, i)),
                   pl.BlockSpec((3, TR), lambda i: (0, i)),
                   pl.BlockSpec((1, TR), lambda i: (0, i))),
        compiler_params=pltpu.CompilerParams(
            dimension_semantics=("parallel",),
            vmem_limit_bytes=VMEM_LIMIT),
    )(dens_t, col_t, dep_t)
    alpha = alpha_t[:, :R].T
    hit = hit_t[:, :R].T
    pc = pc_t[:, :R].T
    pd = pd_t[:, :R].T
    return alpha, hit, pc, pd


def _gather_kernel(feats_ref, idx_ref, wgt_ref, o_ref):
    # Bilinear gather as a one-hot matmul: fold the 4 corner weights (and mask) into
    # a sparse selection matrix and hit the MXU once per point tile.
    hw = feats_ref.shape[1]
    tp = idx_ref.shape[1]
    idx = idx_ref[0]                                       # (TP, 4) int32 flat indices
    wgt = wgt_ref[0]                                       # (TP, 4) f32 weights (masked)
    col = lax.broadcasted_iota(jnp.int32, (tp, hw), 1)
    s = jnp.zeros((tp, hw), jnp.float32)
    for c in range(4):
        s = s + jnp.where(col == idx[:, c:c + 1], wgt[:, c:c + 1], 0.0)
    o_ref[0] = jnp.dot(s.astype(jnp.bfloat16), feats_ref[0].astype(jnp.bfloat16),
                       preferred_element_type=jnp.float32)


def _bilinear_sample_xla(feats, pts, mask):
    # Fallback path (large H*W): plain-JAX bilinear gather.
    # TODO(synk): large feature maps want a scalar-prefetch DMA-gather Pallas kernel.
    n, H, W, C = feats.shape
    x = jnp.clip(pts[..., 0], 0.0, W - 1.0)
    y = jnp.clip(pts[..., 1], 0.0, H - 1.0)
    x0 = jnp.floor(x).astype(jnp.int32)
    y0 = jnp.floor(y).astype(jnp.int32)
    x1 = jnp.minimum(x0 + 1, W - 1)
    y1 = jnp.minimum(y0 + 1, H - 1)
    wx = (x - x0.astype(jnp.float32))[..., None]
    wy = (y - y0.astype(jnp.float32))[..., None]
    gather = jax.vmap(lambda f, yy, xx: f[yy, xx])
    f00 = gather(feats, y0, x0)
    f01 = gather(feats, y0, x1)
    f10 = gather(feats, y1, x0)
    f11 = gather(feats, y1, x1)
    out = (f00 * (1 - wx) * (1 - wy) + f01 * wx * (1 - wy)
           + f10 * (1 - wx) * wy + f11 * wx * wy)
    return out * mask[..., None]


def bilinear_sample(feats, pts, mask, tp=2048):
    """feats: (n, H, W, C); pts: (n, P, 2) pixel coords (x, y); mask: (n, P) float."""
    n, H, W, C = feats.shape
    P = pts.shape[1]
    HW = H * W
    if HW > GATHER_MAX_HW:
        return _bilinear_sample_xla(feats, pts, mask)
    x = jnp.clip(pts[..., 0], 0.0, W - 1.0)
    y = jnp.clip(pts[..., 1], 0.0, H - 1.0)
    x0 = jnp.floor(x).astype(jnp.int32)
    y0 = jnp.floor(y).astype(jnp.int32)
    x1 = jnp.minimum(x0 + 1, W - 1)
    y1 = jnp.minimum(y0 + 1, H - 1)
    wx = x - x0.astype(jnp.float32)
    wy = y - y0.astype(jnp.float32)
    idx = jnp.stack([y0 * W + x0, y0 * W + x1, y1 * W + x0, y1 * W + x1], -1)   # (n, P, 4)
    wgt = jnp.stack([(1 - wx) * (1 - wy), wx * (1 - wy),
                     (1 - wx) * wy, wx * wy], -1)                               # (n, P, 4)
    wgt = wgt * mask[..., None]
    feats_flat = feats.reshape(n, HW, C)
    tp_cap = max(8, (1 << 19) // max(HW, 1))          # keep the one-hot tile <= ~2 MB
    tp = _choose_tile(P, min(tp, tp_cap))
    return pl.pallas_call(
        _gather_kernel,
        out_shape=jax.ShapeDtypeStruct((n, P, C), jnp.float32),
        grid=(n, pl.cdiv(P, tp)),
        in_specs=[pl.BlockSpec((1, HW, C), lambda v, p: (v, 0, 0)),
                  pl.BlockSpec((1, tp, 4), lambda v, p: (v, p, 0)),
                  pl.BlockSpec((1, tp, 4), lambda v, p: (v, p, 0))],
        out_specs=pl.BlockSpec((1, tp, C), lambda v, p: (v, p, 0)),
        compiler_params=pltpu.CompilerParams(
            dimension_semantics=("parallel", "parallel"),
            vmem_limit_bytes=VMEM_LIMIT),
    )(feats_flat, idx, wgt)


# ---------------------------------------------------------------------------
# JAX glue: projection / volume lookup / ray-depth sampling
# ---------------------------------------------------------------------------

def project_points_dict(ref_imgs_info, que_pts):
    imgs = ref_imgs_info['imgs']            # (rfn, H, W, 3)
    poses = ref_imgs_info['poses']          # (rfn, 3, 4) world->cam
    Ks = ref_imgs_info['Ks']                # (rfn, 3, 3)
    rfn, H, W, _ = imgs.shape
    qn, rn, dn, _ = que_pts.shape
    pts = que_pts.reshape(-1, 3)
    R = poses[:, :, :3]
    t = poses[:, :, 3]
    cam = jnp.einsum('rij,pj->rpi', R, pts) + t[:, None, :]
    pix = jnp.einsum('rij,rpj->rpi', Ks, cam)
    depth = pix[..., 2]
    uv = pix[..., :2] / jnp.maximum(depth[..., None], 1e-6)
    in_bounds = ((uv[..., 0] >= 0) & (uv[..., 0] <= W - 1)
                 & (uv[..., 1] >= 0) & (uv[..., 1] <= H - 1))
    mask = ((depth > 1e-4) & in_bounds).astype(jnp.float32)
    rgb = bilinear_sample(imgs, uv, mask)
    return {
        'pts': uv.reshape(rfn, qn, rn, dn, 2),
        'mask': mask.reshape(rfn, qn, rn, dn, 1),
        'rgb': rgb.reshape(rfn, qn, rn, dn, 3),
        'depth': depth.reshape(rfn, qn, rn, dn, 1),
    }


def sample_volume_feats(volume, pts, bbox3d):
    # nearest-neighbor lookup of a (res, res, res, C) volume at world points
    # TODO(synk): tiny XLA gather; volumes are small (res^3) so left in plain JAX.
    res = volume.shape[0]
    mn, mx = bbox3d[0], bbox3d[1]
    norm = (pts - mn) / (mx - mn)
    idx = jnp.clip(jnp.round(norm * (res - 1)).astype(jnp.int32), 0, res - 1)
    return volume[idx[..., 0], idx[..., 1], idx[..., 2]]


def sample_depth(depth_range, coords, dn):
    qn, rn, _ = coords.shape
    near = depth_range[:, 0][:, None, None]
    far = depth_range[:, 1][:, None, None]
    t = jnp.linspace(0.0, 1.0, dn)[None, None, :]
    return jnp.broadcast_to(near + (far - near) * t, (qn, rn, dn))


def depth2points(que_imgs_info, que_depth):
    coords = que_imgs_info['coords']        # (qn, rn, 2) pixel coords
    Ks = que_imgs_info['Ks']
    poses = que_imgs_info['poses']
    qn, rn, _ = coords.shape
    pix = jnp.concatenate([coords, jnp.ones((qn, rn, 1), coords.dtype)], -1)
    Kinv = jnp.linalg.inv(Ks)
    dir_cam = jnp.einsum('qij,qrj->qri', Kinv, pix)
    R = poses[:, :, :3]
    t = poses[:, :, 3]
    Rt = jnp.swapaxes(R, 1, 2)
    cam_center = -jnp.einsum('qij,qj->qi', Rt, t)
    dir_world = jnp.einsum('qij,qrj->qri', Rt, dir_cam)
    que_pts = (cam_center[:, None, None, :]
               + dir_world[:, :, None, :] * que_depth[..., None])
    dir_norm = dir_world / jnp.linalg.norm(dir_world, axis=-1, keepdims=True)
    que_dir = jnp.broadcast_to(dir_norm[:, :, None, :], que_pts.shape)
    return que_pts, que_dir


# ---------------------------------------------------------------------------
# Renderer
# ---------------------------------------------------------------------------

class NeuGraspRendererPallas:
    base_cfg = {'agg_net_type': 'default', 'fine_depth_use_all': False,
                'use_ray_mask': True, 'ray_mask_view_num': 1, 'ray_mask_point_num': 8,
                'disable_view_dir': False, 'use_hierarchical_sampling': False,
                'render_rgb': True, 'render_depth': True, 'sample_volume': False,
                'depth_sample_num': 8, 'ray_batch_num': 1024, 'volume_resolution': 8}

    def __init__(self, cfg, key):
        self.cfg = {**self.base_cfg, **cfg}
        self.use_sdf = self.cfg['agg_net_type'] in ['neus']
        ks = jax.random.split(key, 12)
        s = 0.1
        self.params = {
            'enc_w': jax.random.normal(ks[0], (3, F_DIM), jnp.float32) * s,
            'enc_b': jax.random.normal(ks[1], (F_DIM,), jnp.float32) * s,
            'attn_wq': jax.random.normal(ks[2], (F_DIM, F_DIM), jnp.float32) * s,
            # wk | wv stacked into one (F, 2F) weight -> single fused K/V projection
            'attn_wkv': jax.random.normal(ks[3], (F_DIM, 2 * F_DIM), jnp.float32) * s,
            'attn_wo': jax.random.normal(ks[5], (F_DIM, F_DIM), jnp.float32) * s,
            'vol_w': jax.random.normal(ks[6], (F_DIM, C_VOL), jnp.float32) * s,
            'vol_b': jax.random.normal(ks[7], (C_VOL,), jnp.float32) * s,
            # agg MLP input is built lane-aligned at width 128; rows >= AGG_IN see
            # zero features so their weights never contribute.
            'agg_w1': jax.random.normal(ks[8], (AGG_IN_PAD, HIDDEN), jnp.float32) * s,
            'agg_b1': jax.random.normal(ks[9], (HIDDEN,), jnp.float32) * s,
            'agg_w2': jax.random.normal(ks[10], (HIDDEN, 4), jnp.float32) * s,
            'agg_b2': jax.random.normal(ks[11], (4,), jnp.float32) * s,
        }

    # --- submodules --------------------------------------------------------
    def image_encoder(self, imgs):
        # TODO(synk): real model uses a ResUNet; stand-in is a per-pixel (1x1-conv)
        # linear + ReLU implemented as a lane-dense block-diagonal Pallas matmul.
        n, H, W, C = imgs.shape
        y = pallas_encoder_linear(imgs.reshape(n * H * W, C),
                                  self.params['enc_w'], self.params['enc_b'], 'relu')
        return y.reshape(n, H, W, F_DIM)

    def attention(self, q_feats, kv_feats):
        # TODO(synk): original Attention(32, 0.0) internals unavailable; standard
        # projected scaled-dot-product cross attention, dropout=0 (single-head).
        n, H, W, F = q_feats.shape
        out = pallas_attention(q_feats.reshape(n, H * W, F),
                               kv_feats.reshape(n, H * W, F),
                               self.params['attn_wq'], self.params['attn_wkv'],
                               self.params['attn_wo'])
        return out.reshape(n, H, W, F)

    def feature_volume(self, img_feats, poses, Ks, bbox3d, img_shape):
        # TODO(synk): real model is a 3D UNet over an unprojected cost volume; stand-in
        # = masked-mean unprojection + Pallas linear (F_DIM -> C_VOL).
        res = self.cfg['volume_resolution']
        mn, mx = bbox3d[0], bbox3d[1]
        ax = [jnp.linspace(mn[i], mx[i], res) for i in range(3)]
        gx, gy, gz = jnp.meshgrid(ax[0], ax[1], ax[2], indexing='ij')
        pts = jnp.stack([gx, gy, gz], -1).reshape(-1, 3)
        rfn, H, W, _ = img_feats.shape
        R = poses[:, :, :3]
        t = poses[:, :, 3]
        cam = jnp.einsum('rij,pj->rpi', R, pts) + t[:, None, :]
        pix = jnp.einsum('rij,rpj->rpi', Ks, cam)
        depth = pix[..., 2]
        uv = pix[..., :2] / jnp.maximum(depth[..., None], 1e-6)
        mask = ((depth > 1e-4) & (uv[..., 0] >= 0) & (uv[..., 0] <= W - 1)
                & (uv[..., 1] >= 0) & (uv[..., 1] <= H - 1)).astype(jnp.float32)
        feats = bilinear_sample(img_feats, uv, mask)            # (rfn, P, F)
        wsum = jnp.maximum(jnp.sum(mask, 0), 1e-6)[:, None]
        mean_f = jnp.sum(feats, 0) / wsum                       # (P, F)
        vol = pallas_linear(mean_f, self.params['vol_w'], self.params['vol_b'], 'relu')
        return vol.reshape(res, res, res, C_VOL)

    def get_img_feats(self, ref_imgs_info, prj_dict):
        rfn, H, W, _ = ref_imgs_info['imgs'].shape
        _, qn, rn, dn, _ = prj_dict['pts'].shape
        pts = prj_dict['pts'].reshape(rfn, qn * rn * dn, 2)
        mask = prj_dict['mask'].reshape(rfn, qn * rn * dn)
        prj_dict['img_feats'] = bilinear_sample(
            ref_imgs_info['img_feats'], pts, mask).reshape(rfn, qn, rn, dn, -1)
        prj_dict['residual_feats'] = bilinear_sample(
            ref_imgs_info['residual_feats'], pts, mask).reshape(rfn, qn, rn, dn, -1)
        return prj_dict

    def agg_net(self, prj_dict, que_dir, que_pts, feat_volume, residual_volume, bbox3d):
        # TODO(synk): the real 'default' aggregation net is unavailable; stand-in does
        # masked mean/var view pooling + volume lookups + a fused Pallas MLP
        # -> (density, rgb) with the hidden activation kept on-chip.
        img_f = prj_dict['img_feats']
        resi_f = prj_dict['residual_feats']
        m = prj_dict['mask']
        qn, rn, dn = que_pts.shape[:3]
        wsum = jnp.maximum(jnp.sum(m, 0), 1e-6)
        mean_img = jnp.sum(img_f * m, 0) / wsum
        var_img = jnp.sum(((img_f - mean_img[None]) ** 2) * m, 0) / wsum
        mean_resi = jnp.sum(resi_f * m, 0) / wsum
        vol_f = sample_volume_feats(feat_volume, que_pts, bbox3d)
        rvol_f = sample_volume_feats(residual_volume, que_pts, bbox3d)
        if que_dir is None:
            que_dir = jnp.zeros(que_pts.shape, jnp.float32)
        # build the feature already lane-aligned (width 128): zero-pad inside the concat
        pad = jnp.zeros(que_pts.shape[:3] + (AGG_IN_PAD - AGG_IN,), jnp.float32)
        feat = jnp.concatenate(
            [mean_img, var_img, mean_resi, vol_f, rvol_f, que_dir, pad], -1)
        x = feat.reshape(qn * rn * dn, AGG_IN_PAD)
        out4 = pallas_agg_mlp(x, self.params['agg_w1'], self.params['agg_b1'],
                              self.params['agg_w2'], self.params['agg_b2'])
        density = out4[:, 0].reshape(qn, rn, dn)
        colors = out4[:, 1:4].reshape(qn, rn, dn, 3)
        return density, colors

    # --- rendering ----------------------------------------------------------
    def network_rendering(self, prj_dict, que_dir, que_pts, que_depth,
                          feat_volume, residual_volume, bbox3d):
        density, colors = self.agg_net(prj_dict, que_dir, que_pts,
                                       feat_volume, residual_volume, bbox3d)
        qn, rn, dn = density.shape
        alpha, hit, pc, pd = pallas_render_composite(
            density.reshape(qn * rn, dn),
            colors.reshape(qn * rn, dn, 3),
            que_depth.reshape(qn * rn, dn))
        return {
            'alpha_values': alpha.reshape(qn, rn, dn),
            'colors_nr': colors,
            'hit_prob_nr': hit.reshape(qn, rn, dn),
            'pixel_colors_nr': pc.reshape(qn, rn, 3),
            'pixel_depths_nr': pd.reshape(qn, rn, 1),
        }

    def render_by_depth(self, que_depth, que_imgs_info, ref_imgs_info):
        que_pts, que_dir = depth2points(que_imgs_info, que_depth)
        if self.cfg['disable_view_dir']:
            que_dir = None
        prj_dict = project_points_dict(ref_imgs_info, que_pts)
        prj_dict = self.get_img_feats(ref_imgs_info, prj_dict)
        outputs = self.network_rendering(prj_dict, que_dir, que_pts, que_depth,
                                         ref_imgs_info['feature_volume'],
                                         ref_imgs_info['residual_volume'],
                                         ref_imgs_info['bbox3d'])
        if 'imgs' in que_imgs_info:
            qn, rn, _ = que_imgs_info['coords'].shape
            outputs['pixel_colors_gt'] = bilinear_sample(
                que_imgs_info['imgs'], que_imgs_info['coords'],
                jnp.ones((qn, rn), jnp.float32))
        if self.cfg['use_ray_mask']:
            ray_mask = jnp.sum(prj_dict['mask'].astype(jnp.int32), 0) \
                       > self.cfg['ray_mask_view_num']
            ray_mask = jnp.sum(ray_mask, 2) > self.cfg['ray_mask_point_num']
            outputs['ray_mask'] = ray_mask[..., 0]
        if self.cfg['render_depth']:
            # same value as sum(hit_prob * depth, -1); reuse the kernel output.
            outputs['render_depth'] = outputs['pixel_depths_nr'][..., 0]
        outputs['que_points'] = que_pts
        return outputs

    def render_impl(self, que_imgs_info, ref_imgs_info):
        que_depth = sample_depth(que_imgs_info['depth_range'],
                                 que_imgs_info['coords'],
                                 self.cfg['depth_sample_num'])
        return self.render_by_depth(que_depth, que_imgs_info, ref_imgs_info)

    def render(self, que_imgs_info, ref_imgs_info):
        render_info_all = {}
        coords = que_imgs_info['coords']
        ray_num = coords.shape[1]
        rb = self.cfg['ray_batch_num']   # large default: each pallas_call sees many rays
        for ray_id in range(0, ray_num, rb):
            qi = dict(que_imgs_info)
            qi['coords'] = coords[:, ray_id:ray_id + rb]
            out = self.render_impl(qi, ref_imgs_info)
            for k, v in out.items():
                render_info_all.setdefault(k, []).append(v)
        return {k: jnp.concatenate(v, 1) for k, v in render_info_all.items()}

    def forward(self, data):
        ref_imgs_info = dict(data['ref_imgs_info'])
        que_imgs_info = dict(data['que_imgs_info'])
        # encode imgs + bgs in a single Pallas launch (one pipelined pass over both)
        imgs = ref_imgs_info['imgs']
        bgs = ref_imgs_info['bgs']
        rfn = imgs.shape[0]
        feats = self.image_encoder(jnp.concatenate([imgs, bgs], axis=0))
        ref_imgs_info['img_feats'] = feats[:rfn]
        ref_imgs_info['bg_feats'] = feats[rfn:]
        ref_imgs_info['feature_volume'] = self.feature_volume(
            ref_imgs_info['img_feats'], ref_imgs_info['poses'], ref_imgs_info['Ks'],
            ref_imgs_info['bbox3d'], ref_imgs_info['imgs'].shape)
        ref_imgs_info['residual_volume'] = self.feature_volume(
            ref_imgs_info['img_feats'] - ref_imgs_info['bg_feats'],
            ref_imgs_info['poses'], ref_imgs_info['Ks'],
            ref_imgs_info['bbox3d'], ref_imgs_info['imgs'].shape)
        ref_imgs_info['residual_feats'] = self.attention(
            ref_imgs_info['bg_feats'], ref_imgs_info['img_feats'])
        render_outputs = {}
        if self.cfg['render_rgb']:
            render_outputs = self.render(que_imgs_info, ref_imgs_info)
        # TODO(synk): sample_volume branch depends on TSDF_SAMPLE_POINTS (external data);
        # omitted, cfg['sample_volume'] = False.
        render_outputs['img_feats'] = ref_imgs_info['img_feats']
        return render_outputs


# ---------------------------------------------------------------------------
if __name__ == "__main__":
    key = jax.random.PRNGKey(0)
    k_inputs, k_params = jax.random.split(key)
    ki = jax.random.split(k_inputs, 4)

    rfn, H, W = 2, 16, 16
    qn, ray_num = 1, 16

    ref_imgs = jax.random.uniform(ki[0], (rfn, H, W, 3), jnp.float32)
    ref_bgs = jax.random.uniform(ki[1], (rfn, H, W, 3), jnp.float32)
    que_imgs = jax.random.uniform(ki[2], (qn, H, W, 3), jnp.float32)
    coords = jax.random.uniform(ki[3], (qn, ray_num, 2), jnp.float32,
                                minval=0.0, maxval=W - 1.0)

    eye = jnp.eye(3, dtype=jnp.float32)
    ref_poses = jnp.stack(
        [jnp.concatenate([eye, jnp.array([[0.0], [0.0], [2.0]], jnp.float32)], 1)
         for _ in range(rfn)], 0)
    ref_poses = ref_poses.at[1, 0, 3].set(0.1)      # offset second reference camera
    que_poses = jnp.concatenate(
        [eye, jnp.array([[0.05], [0.0], [2.0]], jnp.float32)], 1)[None]
    K = jnp.array([[16.0, 0.0, 8.0], [0.0, 16.0, 8.0], [0.0, 0.0, 1.0]], jnp.float32)

    data = {
        'ref_imgs_info': {
            'imgs': ref_imgs, 'bgs': ref_bgs, 'poses': ref_poses,
            'Ks': jnp.broadcast_to(K, (rfn, 3, 3)),
            'bbox3d': jnp.array([[-0.5, -0.5, -0.5], [0.5, 0.5, 0.5]], jnp.float32),
        },
        'que_imgs_info': {
            'imgs': que_imgs, 'coords': coords, 'poses': que_poses, 'Ks': K[None],
            'depth_range': jnp.array([[1.5, 2.5]], jnp.float32),
        },
    }

    renderer = NeuGraspRendererPallas({'ray_mask_point_num': 2}, k_params)
    out = renderer.forward(data)
    jax.block_until_ready(out['pixel_colors_nr'])
    jax.block_until_ready(out['pixel_depths_nr'])
    jax.block_until_ready(out['img_feats'])
    print("KERNEL_OK")
</pallas_src>

<mosaic_0001>
module attributes {stable_mosaic.version = 11 : i64} {
  func.func @_linear_kernel(%arg0: i32, %arg1: memref<128x12xf32, #tpu.memory_space<vmem>>, %arg2: memref<12x128xf32, #tpu.memory_space<vmem>>, %arg3: memref<1x128xf32, #tpu.memory_space<vmem>>, %arg4: memref<128x128xf32, #tpu.memory_space<vmem>>) attributes {dimension_semantics = [#tpu.dimension_semantics<parallel>], iteration_bounds = array<i64: 2>, scalar_prefetch = 0 : i64, scratch_operands = 0 : i64, tpu.core_type = #tpu.core_type<tc>, window_params = [{transform_indices = @transform_0, window_bounds = array<i64: 128, 12>}, {pipeline_mode = #tpu.pipeline_mode<synchronous>, transform_indices = @transform_1, window_bounds = array<i64: 12, 128>}, {pipeline_mode = #tpu.pipeline_mode<synchronous>, transform_indices = @transform_2, window_bounds = array<i64: 1, 128>}, {transform_indices = @transform_3, window_bounds = array<i64: 128, 128>}]} {
    %c0 = arith.constant 0 : index
    %c0_0 = arith.constant 0 : index
    %0 = vector.load %arg1[%c0, %c0_0] : memref<128x12xf32, #tpu.memory_space<vmem>>, vector<128x12xf32>
    %1 = arith.truncf %0 : vector<128x12xf32> to vector<128x12xbf16>
    %c0_1 = arith.constant 0 : index
    %c0_2 = arith.constant 0 : index
    %2 = vector.load %arg2[%c0_1, %c0_2] : memref<12x128xf32, #tpu.memory_space<vmem>>, vector<12x128xf32>
    %3 = arith.truncf %2 : vector<12x128xf32> to vector<12x128xbf16>
    %cst = arith.constant dense<0.000000e+00> : vector<128x128xf32>
    %4 = tpu.matmul %1, %3, %cst {dimension_numbers = #tpu.dot_dimension_numbers<[1], [0], [0], [1], [0, 0, 1, 1], [], []>} : vector<128x12xbf16>, vector<12x128xbf16>, vector<128x128xf32> -> vector<128x128xf32>
    %c0_3 = arith.constant 0 : index
    %c0_4 = arith.constant 0 : index
    %5 = vector.load %arg3[%c0_3, %c0_4] : memref<1x128xf32, #tpu.memory_space<vmem>>, vector<1x128xf32>
    %6 = vector.broadcast %5 : vector<1x128xf32> to vector<128x128xf32>
    %7 = arith.addf %4, %6 : vector<128x128xf32>
    %cst_5 = arith.constant 0.000000e+00 : f32
    %8 = vector.broadcast %cst_5 : f32 to vector<128x128xf32>
    %9 = arith.maximumf %7, %8 : vector<128x128xf32>
    %c0_6 = arith.constant 0 : index
    %c0_7 = arith.constant 0 : index
    %10 = vector.load %arg4[%c0_6, %c0_7] : memref<128x128xf32, #tpu.memory_space<vmem>>, vector<128x128xf32>
    tpu.vector_store %arg4[%c0_6, %c0_7], %9 {strides = array<i32>} : memref<128x128xf32, #tpu.memory_space<vmem>>, vector<128x128xf32>,
    return
  }
  func.func @transform_0(%arg0: i32) -> (i32, i32) {
    %c0_i32 = arith.constant 0 : i32
    %c0_i32_0 = arith.constant 0 : i32
    return %arg0, %c0_i32 : i32, i32
  }
  func.func @transform_1(%arg0: i32) -> (i32, i32) {
    %c0_i32 = arith.constant 0 : i32
    %c0_i32_0 = arith.constant 0 : i32
    %c0_i32_1 = arith.constant 0 : i32
    return %c0_i32, %c0_i32_0 : i32, i32
  }
  func.func @transform_2(%arg0: i32) -> (i32, i32) {
    %c0_i32 = arith.constant 0 : i32
    %c0_i32_0 = arith.constant 0 : i32
    %c0_i32_1 = arith.constant 0 : i32
    return %c0_i32, %c0_i32_0 : i32, i32
  }
  func.func @transform_3(%arg0: i32) -> (i32, i32) {
    %c0_i32 = arith.constant 0 : i32
    %c0_i32_0 = arith.constant 0 : i32
    return %arg0, %c0_i32 : i32, i32
  }
}

</mosaic_0001>

<llo_original>
// kernel: tpu_custom_call.1
$region0: #{tpu_custom_call.1}
  #allocation0 [shape = 'u32[]', space=smem, size = 0x4, offset = 0x4, fixed_abs, tag = 'smem constant byte address 0x4 - core index']
  #allocation1 [shape = 'u32[72,128]{1,0:T(1,128)}', space=vmem, size = 0x9000, scoped, tag = 'internal scratch']
  %s0 = inlined_call_operand.vmem [shape: f32[256,12], index: 0, kind: input, shape index: {}]
  %s1 = inlined_call_operand.vmem [shape: f32[12,128], index: 1, kind: input, shape index: {}]
  %s2 = inlined_call_operand.vmem [shape: f32[1,128], index: 2, kind: input, shape index: {}]
  %s3 = inlined_call_operand.hbm [shape: f32[256,128], index: 3, kind: output, shape index: {}]
  %s4 = sld [smem:[#allocation0]]
  $region45: #{tpu_custom_call.1} parent=0
    _
  %s6 = ssub.s32 1, %s4
  %s7 = scalar_select 0, %s6, %s4
  $region1: #{tpu_custom_call.1} parent=0
    #allocation2 [shape = 'u8[131072]{0}', space=vmem, size = 0x20000, scoped, tag = 'output window, operand 0']
    #allocation3 [shape = 's32[2]{0}', space=sflag, size = 0x8, scoped, tag = 'scoped memory for tpu_custom_call.1']
    %8 = vsyncpa [#allocation3], 0
    %s9 = scalar_lea.sflag [#allocation3], 1
    %10 = vsyncpa %s9, 0
    loop: start=0, step=1, limit=4
    $region2: #{tpu_custom_call.1} parent=1 // loop_pre_header
      _
    $region3: #{tpu_custom_call.1} parent=1 // loop_header
      %s12 = sphi 0, %s16
      %p13 = scmp.ge.s32.totalorder %s12, 4
      %s22 = sphi 0, %s24
      %s25 = sphi 0, %s22
      %s26 = sphi 0, %s25
      %s42 = sphi 0, %s26
      %s46 = sphi 0, %s46
      %s48 = sphi 0, %s46
      %s49 = sphi 0, %s48
      %s63 = sphi 0, %s49
      %s67 = sphi 0, %s67
      %s69 = sphi 0, %s67
      %s70 = sphi 0, %s69
      %s84 = sphi 0, %s70
      %s90 = sphi 0, %s92
      %s93 = sphi 0, %s90
      %s94 = sphi 0, %s93
      %s110 = sphi 0, %s94
    $region4: #{tpu_custom_call.1} parent=1 // loop_header_branch
      %15 = sbr.rel (%p13) target = $region8
    $region5: #{tpu_custom_call.1} parent=1 // loop_body
      %s17 = ssub.s32 %s12, 1
      %s18 = ssub.s32 %s12, 2
      %s19 = sadd.s32 %s12, 1
      %s20 = ssub.s32 %s12, %s19
      %p21 = scmp.eq.s32.totalorder %s20, 0
      %s23 = sadd.s32 %s22, 1
      %s24 = scalar_select %p21, %s22, %s23
      %p27 = pneg %p21
      %p28 = scmp.eq.s32.totalorder %s12, 1
      %p29 = por %p27, %p28
      %p30 = scmp.ne.s32.totalorder %s22, %s25
      %p31 = scmp.eq.s32.totalorder %s12, 0
      %p32 = por %p30, %p31
      %p33 = scmp.ne.s32.totalorder %s22, %s25
      %p34 = scmp.eq.s32.totalorder %s17, 1
      %p35 = por %p33, %p34
      %p36 = scmp.ne.s32.totalorder %s25, %s26
      %p37 = scmp.eq.s32.totalorder %s17, 0
      %p38 = por %p36, %p37
      %p39 = scmp.ne.s32.totalorder %s25, %s26
      %p40 = scmp.eq.s32.totalorder %s18, 1
      %p41 = por %p39, %p40
      %p43 = scmp.ne.s32.totalorder %s26, %s42
      %p44 = scmp.eq.s32.totalorder %s18, 0
      %p45 = por %p43, %p44
      %s47 = sadd.s32 %s46, 1
      %p50 = scmp.eq.s32.totalorder %s12, 1
      %p51 = scmp.ne.s32.totalorder %s46, %s48
      %p52 = scmp.eq.s32.totalorder %s12, 0
      %p53 = por %p51, %p52
      %p54 = scmp.ne.s32.totalorder %s46, %s48
      %p55 = scmp.eq.s32.totalorder %s17, 1
      %p56 = por %p54, %p55
      %p57 = scmp.ne.s32.totalorder %s48, %s49
      %p58 = scmp.eq.s32.totalorder %s17, 0
      %p59 = por %p57, %p58
      %p60 = scmp.ne.s32.totalorder %s48, %s49
      %p61 = scmp.eq.s32.totalorder %s18, 1
      %p62 = por %p60, %p61
      %p64 = scmp.ne.s32.totalorder %s49, %s63
      %p65 = scmp.eq.s32.totalorder %s18, 0
      %p66 = por %p64, %p65
      %s68 = sadd.s32 %s67, 1
      %p71 = scmp.eq.s32.totalorder %s12, 1
      %p72 = scmp.ne.s32.totalorder %s67, %s69
      %p73 = scmp.eq.s32.totalorder %s12, 0
      %p74 = por %p72, %p73
      %p75 = scmp.ne.s32.totalorder %s67, %s69
      %p76 = scmp.eq.s32.totalorder %s17, 1
      %p77 = por %p75, %p76
      %p78 = scmp.ne.s32.totalorder %s69, %s70
      %p79 = scmp.eq.s32.totalorder %s17, 0
      %p80 = por %p78, %p79
      %p81 = scmp.ne.s32.totalorder %s69, %s70
      %p82 = scmp.eq.s32.totalorder %s18, 1
      %p83 = por %p81, %p82
      %p85 = scmp.ne.s32.totalorder %s70, %s84
      %p86 = scmp.eq.s32.totalorder %s18, 0
      %p87 = por %p85, %p86
      %s88 = ssub.s32 %s12, %s19
      %p89 = scmp.eq.s32.totalorder %s88, 0
      %s91 = sadd.s32 %s90, 1
      %s92 = scalar_select %p89, %s90, %s91
      %p95 = pneg %p89
      %p96 = scmp.eq.s32.totalorder %s12, 1
      %p97 = por %p95, %p96
      %p98 = scmp.ne.s32.totalorder %s90, %s93
      %p99 = scmp.eq.s32.totalorder %s12, 0
      %p100 = por %p98, %p99
      %p101 = scmp.ne.s32.totalorder %s90, %s93
      %p102 = scmp.eq.s32.totalorder %s17, 1
      %p103 = por %p101, %p102
      %p104 = scmp.ne.s32.totalorder %s93, %s94
      %p105 = scmp.eq.s32.totalorder %s17, 0
      %p106 = por %p104, %p105
      %p107 = scmp.ne.s32.totalorder %s93, %s94
      %p108 = scmp.eq.s32.totalorder %s18, 1
      %p109 = por %p107, %p108
      %p111 = scmp.ne.s32.totalorder %s94, %s110
      %p112 = scmp.eq.s32.totalorder %s18, 0
      %p113 = por %p111, %p112
      %p114 = scmp.le.s32.totalorder 1, %s12
      %p115 = scmp.lt.s32.totalorder %s12, 3
      %p116 = pnand %p114, %p115
      %p117 = pneg %p116
      // Predicated region
      $region9: #{tpu_custom_call.1} parent=5 // pred_check
        _
      $region10: #{tpu_custom_call.1} parent=5 // pred_check_branch
        %119 = sbr.rel (%p116) target = $region12
      $region11: #{tpu_custom_call.1} parent=5 // pred_region
        %s120 = ssub.s32 %s12, 1
        // Predicated region
        $region13: #{tpu_custom_call.1} parent=11 // pred_check
          %p121 = pneg %p59
        $region14: #{tpu_custom_call.1} parent=11 // pred_check_branch
          %123 = sbr.rel (%p121) target = $region16
        $region15: #{tpu_custom_call.1} parent=11 // pred_region
          _
        $region16: #{tpu_custom_call.1} parent=11 // pred_fallthru
          _
        // Predicated region
        $region17: #{tpu_custom_call.1} parent=11 // pred_check
          %p124 = pneg %p80
        $region18: #{tpu_custom_call.1} parent=11 // pred_check_branch
          %126 = sbr.rel (%p124) target = $region20
        $region19: #{tpu_custom_call.1} parent=11 // pred_region
          _
        $region20: #{tpu_custom_call.1} parent=11 // pred_fallthru
          _
      $region12: #{tpu_custom_call.1} parent=5 // pred_fallthru
        _
      %p127 = scmp.lt.s32.totalorder %s12, 2
      // Predicated region
      $region21: #{tpu_custom_call.1} parent=5 // pred_check
        %p128 = pneg %p127
      $region22: #{tpu_custom_call.1} parent=5 // pred_check_branch
        %130 = sbr.rel (%p128) target = $region24
      $region23: #{tpu_custom_call.1} parent=5 // pred_region
        // Predicated region
        $region25: #{tpu_custom_call.1} parent=23 // pred_check
          %p131 = pneg %p32
        $region26: #{tpu_custom_call.1} parent=23 // pred_check_branch
          %133 = sbr.rel (%p131) target = $region28
        $region27: #{tpu_custom_call.1} parent=23 // pred_region
          %s134 = smul.u32 16, %s12
          %p135 = scmp.lt.s32.totalorder %s134, 31
          %s136 = scalar_select %p135, %s134, 31
          %s137 = smul.addr %s136, 8
          %s138 = scalar_lea.vmem %s0, %s137
          %s139 = smul.u32 16, %s12
        $region28: #{tpu_custom_call.1} parent=23 // pred_fallthru
          _
      $region24: #{tpu_custom_call.1} parent=5 // pred_fallthru
        _
      %p140 = scmp.le.s32.totalorder 1, %s12
      %p141 = scmp.lt.s32.totalorder %s12, 3
      %p142 = pnand %p140, %p141
      %p143 = pneg %p142
      // Predicated region
      $region29: #{tpu_custom_call.1} parent=5 // pred_check
        _
      $region30: #{tpu_custom_call.1} parent=5 // pred_check_branch
        %145 = sbr.rel (%p142) target = $region32
      $region31: #{tpu_custom_call.1} parent=5 // pred_region
        %s146 = ssub.s32 %s12, 1
        %s147 = smul.u32 16, %s17
        %p148 = scmp.lt.s32.totalorder %s147, 31
        %s149 = scalar_select %p148, %s147, 31
        %s150 = smul.addr %s149, 8
        %s151 = scalar_lea.vmem %s0, %s150
        %p152 = pneg %p38
        %p153 = pneg %p35
        %p154 = pneg %p59
        %p155 = pneg %p56
        %p156 = pneg %p80
        %p157 = pneg %p77
        %p158 = pneg %p106
        %p159 = pneg %p103
        %s160 = sand.u32 %s93, 1
        %s161 = scalar_lea.sflag [#allocation3], %s160
        %s162 = sand.u32 %s93, 1
        %s163 = smul.addr %s162, 128
        %s164 = scalar_lea.vmem [#allocation2], %s163
        %s165 = smul.u32 16, %s17
        %p166 = scmp.lt.s32.totalorder %s165, 31
        %s167 = scalar_select %p166, %s165, 31
        %s168 = smul.addr %s167, 8
        %s169 = scalar_lea.vmem %s0, %s168
        %s170 = smul.u32 16, %s17
        %s171 = smul.u32 16, %s17
        %v173 = vld [vmem:[%s169] sm:$0xff]
        %v174 = vld [vmem:[%s169 + $0x8] sm:$0xff]
        %v175 = vld [vmem:[%s169 + $0x10] sm:$0xff]
        %v176 = vld [vmem:[%s169 + $0x18] sm:$0xff]
        %v177 = vld [vmem:[%s169 + $0x20] sm:$0xff]
        %v178 = vld [vmem:[%s169 + $0x28] sm:$0xff]
        %v179 = vld [vmem:[%s169 + $0x30] sm:$0xff]
        %v180 = vld [vmem:[%s169 + $0x38] sm:$0xff]
        %v181 = vld [vmem:[%s169 + $0x40] sm:$0xff]
        %v182 = vld [vmem:[%s169 + $0x48] sm:$0xff]
        %v183 = vld [vmem:[%s169 + $0x50] sm:$0xff]
        %v184 = vld [vmem:[%s169 + $0x58] sm:$0xff]
        %v185 = vld [vmem:[%s169 + $0x60] sm:$0xff]
        %v186 = vld [vmem:[%s169 + $0x68] sm:$0xff]
        %v187 = vld [vmem:[%s169 + $0x70] sm:$0xff]
        %v188 = vld [vmem:[%s169 + $0x78] sm:$0xff]
        %v189 = vpack.c.bf16 %v174, %v173
        %v190 = vpack.c.bf16 %v176, %v175
        %v191 = vpack.c.bf16 %v178, %v177
        %v192 = vpack.c.bf16 %v180, %v179
        %v193 = vpack.c.bf16 %v182, %v181
        %v194 = vpack.c.bf16 %v184, %v183
        %v195 = vpack.c.bf16 %v186, %v185
        %v196 = vpack.c.bf16 %v188, %v187
        %v197 = vld [vmem:[%s1] sm:$0xff]
        %v198 = vld [vmem:[%s1 + $0x8] sm:$0xf]
        %v199 = vpack.c.bf16 %v198, %v197
        %v200 = vld [vmem:[%s2] sm:$0x1]
        %v202 = vperm.slane %v200, 0
        %vm204 = vcmask 97280
        %v206 = vsel %vm204, %v189, 0
        %v209 = vsel %vm204, %v190, 0
        %v212 = vsel %vm204, %v191, 0
        %v215 = vsel %vm204, %v192, 0
        %v218 = vsel %vm204, %v193, 0
        %v221 = vsel %vm204, %v194, 0
        %v224 = vsel %vm204, %v195, 0
        %v227 = vsel %vm204, %v196, 0
        %vm229 = vcmask 1045504
        %v231 = vsel %vm229, %v199, 0
        %233 = vmatpush.bf16.msra.mxu0 0
        %234 = vmatpush.bf16.msra.mxu0 0
        %235 = vmatpush.bf16.msra.mxu0 0
        %236 = vmatpush.bf16.msra.mxu0 0
        %237 = vmatpush.bf16.msra.mxu0 0
        %238 = vmatpush.bf16.msra.mxu0 0
        %239 = vmatpush.bf16.msra.mxu0 0
        %240 = vmatpush.bf16.msra.mxu0 %v231
        %241 = vmatmul.bf16.gmra.mxu0 %v206
        %v242 = vpop.f32.mrf.mxu0
        %v243 = vadd.f32 %v202, %v242
        %v244 = vpop.f32.mrf.mxu0
        %v245 = vadd.f32 %v202, %v244
        %246 = vmatmul.bf16.gmra.mxu0 %v209
        %v247 = vpop.f32.mrf.mxu0
        %v248 = vadd.f32 %v202, %v247
        %v249 = vpop.f32.mrf.mxu0
        %v250 = vadd.f32 %v202, %v249
        %251 = vmatmul.bf16.gmra.mxu0 %v212
        %v252 = vpop.f32.mrf.mxu0
        %v253 = vadd.f32 %v202, %v252
        %v254 = vpop.f32.mrf.mxu0
        %v255 = vadd.f32 %v202, %v254
        %256 = vmatmul.bf16.gmra.mxu0 %v215
        %v257 = vpop.f32.mrf.mxu0
        %v258 = vadd.f32 %v202, %v257
        %v259 = vpop.f32.mrf.mxu0
        %v260 = vadd.f32 %v202, %v259
        %261 = vmatmul.bf16.gmra.mxu0 %v218
        %v262 = vpop.f32.mrf.mxu0
        %v263 = vadd.f32 %v202, %v262
        %v264 = vpop.f32.mrf.mxu0
        %v265 = vadd.f32 %v202, %v264
        %266 = vmatmul.bf16.gmra.mxu0 %v221
        %v267 = vpop.f32.mrf.mxu0
        %v268 = vadd.f32 %v202, %v267
        %v269 = vpop.f32.mrf.mxu0
        %v270 = vadd.f32 %v202, %v269
        %271 = vmatmul.bf16.gmra.mxu0 %v224
        %v272 = vpop.f32.mrf.mxu0
        %v273 = vadd.f32 %v202, %v272
        %v274 = vpop.f32.mrf.mxu0
        %v275 = vadd.f32 %v202, %v274
        %276 = vmatmul.bf16.gmra.mxu0 %v227
        %v277 = vpop.f32.mrf.mxu0
        %v278 = vadd.f32 %v202, %v277
        %v279 = vpop.f32.mrf.mxu0
        %v280 = vadd.f32 %v202, %v279
        %281 = vdwg.mxu0
        %v282 = vmax.f32 %v243, 0.0
        %v283 = vmax.f32 %v245, 0.0
        %v284 = vmax.f32 %v248, 0.0
        %v285 = vmax.f32 %v250, 0.0
        %v286 = vmax.f32 %v253, 0.0
        %v287 = vmax.f32 %v255, 0.0
        %v288 = vmax.f32 %v258, 0.0
        %v289 = vmax.f32 %v260, 0.0
        %v290 = vmax.f32 %v263, 0.0
        %v291 = vmax.f32 %v265, 0.0
        %v292 = vmax.f32 %v268, 0.0
        %v293 = vmax.f32 %v270, 0.0
        %v294 = vmax.f32 %v273, 0.0
        %v295 = vmax.f32 %v275, 0.0
        %v296 = vmax.f32 %v278, 0.0
        %v297 = vmax.f32 %v280, 0.0
        %298 = vst [vmem:[%s164] sm:$0xff] %v282
        %299 = vst [vmem:[%s164 + $0x8] sm:$0xff] %v283
        %300 = vst [vmem:[%s164 + $0x10] sm:$0xff] %v284
        %301 = vst [vmem:[%s164 + $0x18] sm:$0xff] %v285
        %302 = vst [vmem:[%s164 + $0x20] sm:$0xff] %v286
        %303 = vst [vmem:[%s164 + $0x28] sm:$0xff] %v287
        %304 = vst [vmem:[%s164 + $0x30] sm:$0xff] %v288
        %305 = vst [vmem:[%s164 + $0x38] sm:$0xff] %v289
        %306 = vst [vmem:[%s164 + $0x40] sm:$0xff] %v290
        %307 = vst [vmem:[%s164 + $0x48] sm:$0xff] %v291
        %308 = vst [vmem:[%s164 + $0x50] sm:$0xff] %v292
        %309 = vst [vmem:[%s164 + $0x58] sm:$0xff] %v293
        %310 = vst [vmem:[%s164 + $0x60] sm:$0xff] %v294
        %311 = vst [vmem:[%s164 + $0x68] sm:$0xff] %v295
        %312 = vst [vmem:[%s164 + $0x70] sm:$0xff] %v296
        %313 = vst [vmem:[%s164 + $0x78] sm:$0xff] %v297
        %s314 = sand.u32 %s93, 1
        %s315 = scalar_lea.sflag [#allocation3], %s314
        %s316 = sand.u32 %s93, 1
        %s317 = smul.addr %s316, 128
        %s318 = scalar_lea.vmem [#allocation2], %s317
        // Predicated region
        $region33: #{tpu_custom_call.1} parent=31 // pred_check
          %p319 = pneg %p103
        $region34: #{tpu_custom_call.1} parent=31 // pred_check_branch
          %321 = sbr.rel (%p319) target = $region36
        $region35: #{tpu_custom_call.1} parent=31 // pred_region
          %s322 = smul.u32 16, %s17
          %324 = vsyncadd %s315, 0
          %s325 = smul.addr %s322, 8
          %s326 = scalar_lea.hbm %s3, %s325
          %s327 = sshll.u32 %s318, 4
          %s328 = int_to_ptr.vmem [resolvable:$true] %s327
          %s329 = sshll.u32 %s326, 4
          %s330 = int_to_ptr.hbm [resolvable:$true] %s329
          %335 = dma.vmem_to_hbm [thread:$0]  %s328, 2048, %s330, %s315, 128, 128, 8
        $region36: #{tpu_custom_call.1} parent=31 // pred_fallthru
          _
      $region32: #{tpu_custom_call.1} parent=5 // pred_fallthru
        _
      %p336 = scmp.le.s32.totalorder 2, %s12
      // Predicated region
      $region37: #{tpu_custom_call.1} parent=5 // pred_check
        %p337 = pneg %p336
      $region38: #{tpu_custom_call.1} parent=5 // pred_check_branch
        %339 = sbr.rel (%p337) target = $region40
      $region39: #{tpu_custom_call.1} parent=5 // pred_region
        %s340 = ssub.s32 %s12, 2
        // Predicated region
        $region41: #{tpu_custom_call.1} parent=39 // pred_check
          %p341 = pneg %p109
        $region42: #{tpu_custom_call.1} parent=39 // pred_check_branch
          %343 = sbr.rel (%p341) target = $region44
        $region43: #{tpu_custom_call.1} parent=39 // pred_region
          %s344 = sand.u32 %s94, 1
          %s345 = scalar_lea.sflag [#allocation3], %s344
          %s346 = sand.u32 %s94, 1
          %s347 = smul.addr %s346, 128
          %s348 = scalar_lea.vmem [#allocation2], %s347
          %350 = dma.done %s345, 2048
        $region44: #{tpu_custom_call.1} parent=39 // pred_fallthru
          _
      $region40: #{tpu_custom_call.1} parent=5 // pred_fallthru
        _
    $region6: #{tpu_custom_call.1} parent=1 // loop_footer
      %s16 = sadd.s32 1, %s12
    $region7: #{tpu_custom_call.1} parent=1 // loop_footer_branch
      %11 = sbr.rel target = $region3
    $region8: #{tpu_custom_call.1} parent=1 // loop_exit
      _
    %351 = vsyncpa [#allocation3], 1
    %s352 = scalar_lea.sflag [#allocation3], 1
    %353 = vsyncpa %s352, 1

</llo_original>
